<compile_context>
chip_gen: v6e
topology: v6e:2x2x1
jax: 0.10.0
libtpu: 0.0.40
codegen_flags: <defaults>
</compile_context>

<pallas_src>
import numpy as np
import jax
import jax.numpy as jnp
from jax.experimental import pallas as pl
from jax.experimental.pallas import tpu as pltpu


_TE_MAX = 1024   # edge tile  (output lanes / matmul N-dim)
_TN_MAX = 2048   # node tile  (matmul contraction dim)


def _round_up(x, m):
    return ((x + m - 1) // m) * m


def _cartesian_kernel(rowcol_ref, post_ref, out_ref, max_ref):
    # Grid = (E tiles [parallel], N tiles [arbitrary / reduction]).
    n = pl.program_id(1)
    tn = post_ref.shape[1]

    @pl.when(n == 0)
    def _():
        out_ref[...] = jnp.zeros_like(out_ref)

    # Localize endpoints to this node tile: two (1, TE) scalar-broadcast subs
    # instead of offsetting the (TN, TE) iota (keeps the iota grid-invariant).
    base = n * tn
    row = rowcol_ref[0:1, :] - base          # (1, TE) int32
    col = rowcol_ref[1:2, :] - base          # (1, TE) int32
    te = row.shape[1]

    # Transposed +/-1 one-hot selection: sel_t[nn, e] = (nn==row_e) - (nn==col_e).
    # Self-loops (row == col) and endpoints outside this node tile contribute 0.
    node_ids = jax.lax.broadcasted_iota(jnp.int32, (tn, te), 0)
    sel_t = ((node_ids == row).astype(jnp.float32)
             - (node_ids == col).astype(jnp.float32))

    # cart^T tile: (8, TN) @ (TN, TE) -> (8, TE).  One-hots are disjoint across
    # node tiles, so accumulating into the resident output block is exact.
    out_ref[...] += jnp.dot(post_ref[...], sel_t,
                            preferred_element_type=jnp.float32,
                            precision=jax.lax.Precision.HIGHEST)

    # Fused abs-max: per-lane sublane reduce of the finished tile; the wrapper
    # only has to reduce a tiny (1, e_pad) vector instead of the full output.
    @pl.when(n == pl.num_programs(1) - 1)
    def _():
        max_ref[...] = jnp.max(jnp.abs(out_ref[...]), axis=0, keepdims=True)


def cartesian_edge_attr(pos, edge_index):
    """pos: (N, D<=8) float, edge_index: (2, E) int  ->  edge_attr (E, D)."""
    N, D = pos.shape
    E = edge_index.shape[1]
    assert D <= 8, "coordinate dim must fit the 8-sublane layout"

    if E == 0:
        # Fallback branch of the torch module: empty edge_attr with 3 features.
        return jnp.zeros((0, 3), dtype=pos.dtype)

    e_pad128 = _round_up(E, 128)
    te = min(_TE_MAX, e_pad128)
    # Guarantee >= 2 tiles on the "parallel" E axis when possible so both v7x
    # TensorCores get work (no effect on single-TC v5e/v6e).
    if e_pad128 >= 256 and te >= e_pad128:
        te = _round_up(e_pad128 // 2, 128)
    e_pad = _round_up(E, te)

    tn = min(_TN_MAX, _round_up(N, 128))
    n_pad = _round_up(N, tn)

    # Lane-dense transposed layouts: coords on sublanes, nodes/edges on lanes.
    post = jnp.zeros((8, n_pad), jnp.float32).at[:D, :N].set(
        pos.astype(jnp.float32).T)
    # Packed row/col; padded edges have row == col == 0 -> one-hots cancel -> 0.
    rowcol = jnp.zeros((2, e_pad), jnp.int32).at[:, :E].set(
        edge_index.astype(jnp.int32))

    grid = (e_pad // te, n_pad // tn)

    out_t, max_t = pl.pallas_call(
        _cartesian_kernel,
        out_shape=(jax.ShapeDtypeStruct((8, e_pad), jnp.float32),
                   jax.ShapeDtypeStruct((1, e_pad), jnp.float32)),
        grid=grid,
        in_specs=[
            pl.BlockSpec((2, te), lambda e, n: (0, e)),   # packed row/col
            pl.BlockSpec((8, tn), lambda e, n: (0, n)),   # pos^T
        ],
        out_specs=[
            pl.BlockSpec((8, te), lambda e, n: (0, e)),   # cart^T
            pl.BlockSpec((1, te), lambda e, n: (0, e)),   # per-lane |cart| max
        ],
        compiler_params=pltpu.CompilerParams(
            dimension_semantics=("parallel", "arbitrary"),
            vmem_limit_bytes=48 * 1024 * 1024,
        ),
    )(rowcol, post)

    cart = out_t[:D, :E].T          # (E, D) unnormalized relative positions

    # torch_geometric Cartesian(norm=True, max=None): cart / (2*max|cart|) + 0.5.
    # Padded lanes/sublanes are exactly 0, so they never affect the abs-max.
    # If every edge is a self-loop the max is 0 and this yields inf/nan, exactly
    # like the PyTorch reference.
    max_val = jnp.max(max_t)
    edge_attr = cart / (2.0 * max_val) + 0.5
    return edge_attr.astype(pos.dtype)


if __name__ == "__main__":
    key = jax.random.PRNGKey(0)
    k1, k2, k3, k4, k5, k6 = jax.random.split(key, 6)

    def ref_np(pos, ei):
        pos_np = np.asarray(pos)
        ei_np = np.asarray(ei)
        cart = pos_np[ei_np[0]] - pos_np[ei_np[1]]
        return cart / (2.0 * np.abs(cart).max()) + 0.5

    D = 3

    # Small graph: 16 nodes, 24 edges (single-tile path).
    N, E = 16, 24
    pos = jax.random.uniform(k1, (N, D), dtype=jnp.float32)
    edge_index = jax.random.randint(k2, (2, E), minval=0, maxval=N,
                                    dtype=jnp.int32)
    edge_attr = jax.block_until_ready(cartesian_edge_attr(pos, edge_index))
    np.testing.assert_allclose(np.asarray(edge_attr), ref_np(pos, edge_index),
                               rtol=1e-5, atol=1e-5)

    # Moderate graph: several parallel E tiles, single node tile (N <= TN_MAX).
    N2, E2 = 1500, 4000
    pos2 = jax.random.uniform(k3, (N2, D), dtype=jnp.float32)
    edge_index2 = jax.random.randint(k4, (2, E2), minval=0, maxval=N2,
                                     dtype=jnp.int32)
    edge_attr2 = jax.block_until_ready(cartesian_edge_attr(pos2, edge_index2))
    np.testing.assert_allclose(np.asarray(edge_attr2), ref_np(pos2, edge_index2),
                               rtol=1e-5, atol=1e-5)

    # Graph exercising the N-axis accumulation (2 node tiles) and the forced
    # >=2 E-tile split for the parallel axis.
    N3, E3 = 2500, 600
    pos3 = jax.random.uniform(k5, (N3, D), dtype=jnp.float32)
    edge_index3 = jax.random.randint(k6, (2, E3), minval=0, maxval=N3,
                                     dtype=jnp.int32)
    edge_attr3 = jax.block_until_ready(cartesian_edge_attr(pos3, edge_index3))
    np.testing.assert_allclose(np.asarray(edge_attr3), ref_np(pos3, edge_index3),
                               rtol=1e-5, atol=1e-5)

    # Empty-edge fallback branch of the torch module.
    empty_attr = cartesian_edge_attr(pos, jnp.zeros((2, 0), jnp.int32))
    assert empty_attr.shape == (0, 3)

    print("KERNEL_OK")
</pallas_src>

<mosaic_0001>
module attributes {stable_mosaic.version = 11 : i64} {
  func.func @_cartesian_kernel(%arg0: i32, %arg1: i32, %arg2: memref<2x128xi32, #tpu.memory_space<vmem>>, %arg3: memref<8x128xf32, #tpu.memory_space<vmem>>, %arg4: memref<8x128xf32, #tpu.memory_space<vmem>>, %arg5: memref<1x128xf32, #tpu.memory_space<vmem>>) attributes {dimension_semantics = [#tpu.dimension_semantics<parallel>, #tpu.dimension_semantics<arbitrary>], iteration_bounds = array<i64: 1, 1>, scalar_prefetch = 0 : i64, scratch_operands = 0 : i64, tpu.core_type = #tpu.core_type<tc>, window_params = [{transform_indices = @transform_0, window_bounds = array<i64: 2, 128>}, {transform_indices = @transform_1, window_bounds = array<i64: 8, 128>}, {transform_indices = @transform_2, window_bounds = array<i64: 8, 128>}, {transform_indices = @transform_3, window_bounds = array<i64: 1, 128>}]} {
    %c0_i32 = arith.constant 0 : i32
    %0 = arith.cmpi eq, %arg1, %c0_i32 : i32
    %1 = arith.extui %0 : i1 to i32
    %c0_i32_0 = arith.constant 0 : i32
    %2 = arith.cmpi ne, %1, %c0_i32_0 : i32
    scf.if %2 {
      %cst_11 = arith.constant 0.000000e+00 : f32
      %28 = vector.broadcast %cst_11 : f32 to vector<8x128xf32>
      %c0_12 = arith.constant 0 : index
      %c0_13 = arith.constant 0 : index
      %29 = vector.load %arg4[%c0_12, %c0_13] : memref<8x128xf32, #tpu.memory_space<vmem>>, vector<8x128xf32>
      tpu.vector_store %arg4[%c0_12, %c0_13], %28 {strides = array<i32>} : memref<8x128xf32, #tpu.memory_space<vmem>>, vector<8x128xf32>,
    } else {
    }
    %c128_i32 = arith.constant 128 : i32
    %3 = arith.muli %arg1, %c128_i32 : i32
    %c0 = arith.constant 0 : index
    %c0_1 = arith.constant 0 : index
    %4 = vector.load %arg2[%c0, %c0_1] : memref<2x128xi32, #tpu.memory_space<vmem>>, vector<1x128xi32>
    %5 = vector.broadcast %3 : i32 to vector<1x128xi32>
    %6 = arith.subi %4, %5 : vector<1x128xi32>
    %c1 = arith.constant 1 : index
    %c0_2 = arith.constant 0 : index
    %7 = vector.load %arg2[%c1, %c0_2] : memref<2x128xi32, #tpu.memory_space<vmem>>, vector<1x128xi32>
    %8 = vector.broadcast %3 : i32 to vector<1x128xi32>
    %9 = arith.subi %7, %8 : vector<1x128xi32>
    %10 = tpu.iota {dimensions = array<i32: 0>} : vector<128x128xi32>
    %11 = vector.broadcast %6 : vector<1x128xi32> to vector<128x128xi32>
    %12 = arith.cmpi eq, %10, %11 : vector<128x128xi32>
    %13 = arith.extui %12 : vector<128x128xi1> to vector<128x128xi32>
    %14 = arith.sitofp %13 : vector<128x128xi32> to vector<128x128xf32>
    %15 = vector.broadcast %9 : vector<1x128xi32> to vector<128x128xi32>
    %16 = arith.cmpi eq, %10, %15 : vector<128x128xi32>
    %17 = arith.extui %16 : vector<128x128xi1> to vector<128x128xi32>
    %18 = arith.sitofp %17 : vector<128x128xi32> to vector<128x128xf32>
    %19 = arith.subf %14, %18 : vector<128x128xf32>
    %c0_3 = arith.constant 0 : index
    %c0_4 = arith.constant 0 : index
    %20 = vector.load %arg4[%c0_3, %c0_4] : memref<8x128xf32, #tpu.memory_space<vmem>>, vector<8x128xf32>
    %c0_5 = arith.constant 0 : index
    %c0_6 = arith.constant 0 : index
    %21 = vector.load %arg3[%c0_5, %c0_6] : memref<8x128xf32, #tpu.memory_space<vmem>>, vector<8x128xf32>
    %cst = arith.constant dense<0.000000e+00> : vector<8x128xf32>
    %22 = tpu.matmul %21, %19, %cst {dimension_numbers = #tpu.dot_dimension_numbers<[1], [0], [0], [1], [0, 0, 1, 1], [], []>, precision = #tpu.contract_precision<fp32>} : vector<8x128xf32>, vector<128x128xf32>, vector<8x128xf32> -> vector<8x128xf32>
    %23 = arith.addf %20, %22 : vector<8x128xf32>
    %c0_7 = arith.constant 0 : index
    %c0_8 = arith.constant 0 : index
    %24 = vector.load %arg4[%c0_7, %c0_8] : memref<8x128xf32, #tpu.memory_space<vmem>>, vector<8x128xf32>
    tpu.vector_store %arg4[%c0_7, %c0_8], %23 {strides = array<i32>} : memref<8x128xf32, #tpu.memory_space<vmem>>, vector<8x128xf32>,
    %c0_i32_9 = arith.constant 0 : i32
    %25 = arith.cmpi eq, %arg1, %c0_i32_9 : i32
    %26 = arith.extui %25 : i1 to i32
    %c0_i32_10 = arith.constant 0 : i32
    %27 = arith.cmpi ne, %26, %c0_i32_10 : i32
    scf.if %27 {
      %c0_11 = arith.constant 0 : index
      %c0_12 = arith.constant 0 : index
      %28 = vector.load %arg4[%c0_11, %c0_12] : memref<8x128xf32, #tpu.memory_space<vmem>>, vector<8x128xf32>
      %29 = math.absf %28 : vector<8x128xf32>
      %cst_13 = arith.constant dense<0xFF800000> : vector<128xf32>
      %30 = vector.multi_reduction <maximumf>, %29, %cst_13 [0] : vector<8x128xf32> to vector<128xf32>
      %31 = vector.shape_cast %30 : vector<128xf32> to vector<1x128xf32>
      %c0_14 = arith.constant 0 : index
      %c0_15 = arith.constant 0 : index
      %32 = vector.load %arg5[%c0_14, %c0_15] : memref<1x128xf32, #tpu.memory_space<vmem>>, vector<1x128xf32>
      tpu.vector_store %arg5[%c0_14, %c0_15], %31 {strides = array<i32>} : memref<1x128xf32, #tpu.memory_space<vmem>>, vector<1x128xf32>,
    } else {
    }
    return
  }
  func.func @transform_0(%arg0: i32, %arg1: i32) -> (i32, i32) {
    %c0_i32 = arith.constant 0 : i32
    %c0_i32_0 = arith.constant 0 : i32
    return %c0_i32, %arg0 : i32, i32
  }
  func.func @transform_1(%arg0: i32, %arg1: i32) -> (i32, i32) {
    %c0_i32 = arith.constant 0 : i32
    %c0_i32_0 = arith.constant 0 : i32
    return %c0_i32, %arg1 : i32, i32
  }
  func.func @transform_2(%arg0: i32, %arg1: i32) -> (i32, i32) {
    %c0_i32 = arith.constant 0 : i32
    %c0_i32_0 = arith.constant 0 : i32
    return %c0_i32, %arg0 : i32, i32
  }
  func.func @transform_3(%arg0: i32, %arg1: i32) -> (i32, i32) {
    %c0_i32 = arith.constant 0 : i32
    %c0_i32_0 = arith.constant 0 : i32
    return %c0_i32, %arg0 : i32, i32
  }
}

</mosaic_0001>

<llo_original>
// kernel: tpu_custom_call.1
$region0: #{tpu_custom_call.1}
  #allocation0 [shape = 'u32[]', space=smem, size = 0x4, offset = 0x4, fixed_abs, tag = 'smem constant byte address 0x4 - core index']
  #allocation1 [shape = 'u32[144,128]{1,0:T(1,128)}', space=vmem, size = 0x12000, scoped, tag = 'internal scratch']
  %s0 = inlined_call_operand.hbm [shape: s32[2,128], index: 0, kind: input, shape index: {}]
  %s1 = inlined_call_operand.hbm [shape: f32[8,128], index: 1, kind: input, shape index: {}]
  %s2 = inlined_call_operand.hbm [shape: f32[8,128], index: 2, kind: output, shape index: {0}]
  %s3 = inlined_call_operand.hbm [shape: f32[1,128], index: 3, kind: output, shape index: {1}]
  %4 = xla_tuple %s2, %s3
  %s5 = sld [smem:[#allocation0]]
  $region42: #{tpu_custom_call.1} parent=0
    _
  %s7 = ssub.s32 1, %s5
  %s8 = scalar_select 0, %s7, %s5
  $region1: #{tpu_custom_call.1} parent=0
    #allocation2 [shape = 'u8[1024]{0}', space=vmem, size = 0x400, scoped, tag = 'input window, operand 0, single buffered']
    #allocation3 [shape = 's32[1]{0}', space=sflag, size = 0x4, scoped, tag = 'scoped memory for tpu_custom_call.1']
    #allocation4 [shape = 's32[1]{0}', space=sflag, size = 0x4, scoped, tag = 'scoped memory for tpu_custom_call.1']
    #allocation5 [shape = 'u8[4096]{0}', space=vmem, size = 0x1000, scoped, tag = 'input window, operand 1, single buffered']
    #allocation6 [shape = 's32[1]{0}', space=sflag, size = 0x4, scoped, tag = 'scoped memory for tpu_custom_call.1']
    #allocation7 [shape = 'u8[4096]{0}', space=vmem, size = 0x1000, scoped, tag = 'output window, operand 0, single buffered']
    #allocation8 [shape = 'u8[512]{0}', space=vmem, size = 0x400, scoped, tag = 'output window, operand 1, single buffered']
    #allocation9 [shape = 's32[1]{0}', space=sflag, size = 0x4, scoped, tag = 'scoped memory for tpu_custom_call.1']
    %9 = vsyncpa [#allocation3], 0
    %10 = vsyncpa [#allocation6], 0
    %11 = vsyncpa [#allocation4], 0
    %12 = vsyncpa [#allocation9], 0
    // Predicated region
    $region2: #{tpu_custom_call.1} parent=1 // pred_check
      _
    $region3: #{tpu_custom_call.1} parent=1 // pred_check_branch
      %14 = sbr.rel (0) target = $region5
    $region4: #{tpu_custom_call.1} parent=1 // pred_region
      %s16 = ssub.s32 32, 32
      %17 = vsyncadd [#allocation3], %s16
      %s19 = sshll.u32 [#allocation2], 4
      %s20 = int_to_ptr.vmem [resolvable:$true] %s19
      %22 = dma.hbm_to_vmem [thread:$0]  %s0, 32, %s20, [#allocation3]
    $region5: #{tpu_custom_call.1} parent=1 // pred_fallthru
      _
    // Predicated region
    $region6: #{tpu_custom_call.1} parent=1 // pred_check
      _
    $region7: #{tpu_custom_call.1} parent=1 // pred_check_branch
      %24 = sbr.rel (0) target = $region9
    $region8: #{tpu_custom_call.1} parent=1 // pred_region
      %s26 = ssub.s32 128, 128
      %27 = vsyncadd [#allocation6], %s26
      %s29 = sshll.u32 [#allocation5], 4
      %s30 = int_to_ptr.vmem [resolvable:$true] %s29
      %32 = dma.hbm_to_vmem [thread:$0]  %s1, 128, %s30, [#allocation6]
    $region9: #{tpu_custom_call.1} parent=1 // pred_fallthru
      _
    // Predicated region
    $region10: #{tpu_custom_call.1} parent=1 // pred_check
      _
    $region11: #{tpu_custom_call.1} parent=1 // pred_check_branch
      %34 = sbr.rel (0) target = $region13
    $region12: #{tpu_custom_call.1} parent=1 // pred_region
      %35 = dma.done [#allocation3], 32
    $region13: #{tpu_custom_call.1} parent=1 // pred_fallthru
      _
    // Predicated region
    $region14: #{tpu_custom_call.1} parent=1 // pred_check
      _
    $region15: #{tpu_custom_call.1} parent=1 // pred_check_branch
      %37 = sbr.rel (0) target = $region17
    $region16: #{tpu_custom_call.1} parent=1 // pred_region
      %38 = dma.done [#allocation6], 128
    $region17: #{tpu_custom_call.1} parent=1 // pred_fallthru
      _
    %p39 = scmp.eq.s32.totalorder 0, 0
    // Predicated region
    $region18: #{tpu_custom_call.1} parent=1 // pred_check
      %p40 = pneg %p39
    $region19: #{tpu_custom_call.1} parent=1 // pred_check_branch
      %42 = sbr.rel (%p40) target = $region21
    $region20: #{tpu_custom_call.1} parent=1 // pred_region
      %43 = vst [vmem:[#allocation7] sm:$0xff] 0.0
    $region21: #{tpu_custom_call.1} parent=1 // pred_fallthru
      _
    %s44 = smul.u32 0, 128
    %v45 = vld [vmem:[#allocation2] sm:$0x1]
    %v46 = vstv %s44
    %v47 = vsub.s32 %v45, %v46
    %v48 = vld [vmem:[#allocation2 + $0x1] sm:$0x1]
    %v49 = vsub.s32 %v48, %v46
    %v50 = vlaneseq
    %v51 = vshrl.u32 %v50, 7
    %v52 = vadd.s32 %v51, 8
    %v53 = vadd.s32 %v51, 16
    %v54 = vadd.s32 %v51, 24
    %v55 = vadd.s32 %v51, 32
    %v56 = vadd.s32 %v51, 40
    %v57 = vadd.s32 %v51, 48
    %v58 = vadd.s32 %v51, 56
    %v59 = vadd.s32 %v51, 64
    %v60 = vadd.s32 %v51, 72
    %v61 = vadd.s32 %v51, 80
    %v62 = vadd.s32 %v51, 88
    %v63 = vadd.s32 %v51, 96
    %v64 = vadd.s32 %v51, 104
    %v65 = vadd.s32 %v51, 112
    %v66 = vadd.s32 %v51, 120
    %v67 = vlaneseq
    %v68 = vshrl.u32 %v67, 7
    %v69 = vsub.s32 0, %v68
    %v70 = vrot.slane %v47, %v69
    %vm71 = vcmp.eq.s32.totalorder %v51, %v70
    %vm72 = vcmp.eq.s32.totalorder %v52, %v70
    %vm73 = vcmp.eq.s32.totalorder %v53, %v70
    %vm74 = vcmp.eq.s32.totalorder %v54, %v70
    %vm75 = vcmp.eq.s32.totalorder %v55, %v70
    %vm76 = vcmp.eq.s32.totalorder %v56, %v70
    %vm77 = vcmp.eq.s32.totalorder %v57, %v70
    %vm78 = vcmp.eq.s32.totalorder %v58, %v70
    %vm79 = vcmp.eq.s32.totalorder %v59, %v70
    %vm80 = vcmp.eq.s32.totalorder %v60, %v70
    %vm81 = vcmp.eq.s32.totalorder %v61, %v70
    %vm82 = vcmp.eq.s32.totalorder %v62, %v70
    %vm83 = vcmp.eq.s32.totalorder %v63, %v70
    %vm84 = vcmp.eq.s32.totalorder %v64, %v70
    %vm85 = vcmp.eq.s32.totalorder %v65, %v70
    %vm86 = vcmp.eq.s32.totalorder %v66, %v70
    %v87 = vsel %vm71, 1, 0
    %v88 = vsel %vm72, 1, 0
    %v89 = vsel %vm73, 1, 0
    %v90 = vsel %vm74, 1, 0
    %v91 = vsel %vm75, 1, 0
    %v92 = vsel %vm76, 1, 0
    %v93 = vsel %vm77, 1, 0
    %v94 = vsel %vm78, 1, 0
    %v95 = vsel %vm79, 1, 0
    %v96 = vsel %vm80, 1, 0
    %v97 = vsel %vm81, 1, 0
    %v98 = vsel %vm82, 1, 0
    %v99 = vsel %vm83, 1, 0
    %v100 = vsel %vm84, 1, 0
    %v101 = vsel %vm85, 1, 0
    %v102 = vsel %vm86, 1, 0
    %v103 = vcvt.s32.f32 %v87
    %v104 = vcvt.s32.f32 %v88
    %v105 = vcvt.s32.f32 %v89
    %v106 = vcvt.s32.f32 %v90
    %v107 = vcvt.s32.f32 %v91
    %v108 = vcvt.s32.f32 %v92
    %v109 = vcvt.s32.f32 %v93
    %v110 = vcvt.s32.f32 %v94
    %v111 = vcvt.s32.f32 %v95
    %v112 = vcvt.s32.f32 %v96
    %v113 = vcvt.s32.f32 %v97
    %v114 = vcvt.s32.f32 %v98
    %v115 = vcvt.s32.f32 %v99
    %v116 = vcvt.s32.f32 %v100
    %v117 = vcvt.s32.f32 %v101
    %v118 = vcvt.s32.f32 %v102
    %v119 = vlaneseq
    %v120 = vshrl.u32 %v119, 7
    %v121 = vsub.s32 0, %v120
    %v122 = vrot.slane %v49, %v121
    %vm123 = vcmp.eq.s32.totalorder %v51, %v122
    %vm124 = vcmp.eq.s32.totalorder %v52, %v122
    %vm125 = vcmp.eq.s32.totalorder %v53, %v122
    %vm126 = vcmp.eq.s32.totalorder %v54, %v122
    %vm127 = vcmp.eq.s32.totalorder %v55, %v122
    %vm128 = vcmp.eq.s32.totalorder %v56, %v122
    %vm129 = vcmp.eq.s32.totalorder %v57, %v122
    %vm130 = vcmp.eq.s32.totalorder %v58, %v122
    %vm131 = vcmp.eq.s32.totalorder %v59, %v122
    %vm132 = vcmp.eq.s32.totalorder %v60, %v122
    %vm133 = vcmp.eq.s32.totalorder %v61, %v122
    %vm134 = vcmp.eq.s32.totalorder %v62, %v122
    %vm135 = vcmp.eq.s32.totalorder %v63, %v122
    %vm136 = vcmp.eq.s32.totalorder %v64, %v122
    %vm137 = vcmp.eq.s32.totalorder %v65, %v122
    %vm138 = vcmp.eq.s32.totalorder %v66, %v122
    %v139 = vsel %vm123, 1, 0
    %v140 = vsel %vm124, 1, 0
    %v141 = vsel %vm125, 1, 0
    %v142 = vsel %vm126, 1, 0
    %v143 = vsel %vm127, 1, 0
    %v144 = vsel %vm128, 1, 0
    %v145 = vsel %vm129, 1, 0
    %v146 = vsel %vm130, 1, 0
    %v147 = vsel %vm131, 1, 0
    %v148 = vsel %vm132, 1, 0
    %v149 = vsel %vm133, 1, 0
    %v150 = vsel %vm134, 1, 0
    %v151 = vsel %vm135, 1, 0
    %v152 = vsel %vm136, 1, 0
    %v153 = vsel %vm137, 1, 0
    %v154 = vsel %vm138, 1, 0
    %v155 = vcvt.s32.f32 %v139
    %v156 = vcvt.s32.f32 %v140
    %v157 = vcvt.s32.f32 %v141
    %v158 = vcvt.s32.f32 %v142
    %v159 = vcvt.s32.f32 %v143
    %v160 = vcvt.s32.f32 %v144
    %v161 = vcvt.s32.f32 %v145
    %v162 = vcvt.s32.f32 %v146
    %v163 = vcvt.s32.f32 %v147
    %v164 = vcvt.s32.f32 %v148
    %v165 = vcvt.s32.f32 %v149
    %v166 = vcvt.s32.f32 %v150
    %v167 = vcvt.s32.f32 %v151
    %v168 = vcvt.s32.f32 %v152
    %v169 = vcvt.s32.f32 %v153
    %v170 = vcvt.s32.f32 %v154
    %v171 = vsub.f32 %v103, %v155
    %v172 = vsub.f32 %v104, %v156
    %v173 = vsub.f32 %v105, %v157
    %v174 = vsub.f32 %v106, %v158
    %v175 = vsub.f32 %v107, %v159
    %v176 = vsub.f32 %v108, %v160
    %v177 = vsub.f32 %v109, %v161
    %v178 = vsub.f32 %v110, %v162
    %v179 = vsub.f32 %v111, %v163
    %v180 = vsub.f32 %v112, %v164
    %v181 = vsub.f32 %v113, %v165
    %v182 = vsub.f32 %v114, %v166
    %v183 = vsub.f32 %v115, %v167
    %v184 = vsub.f32 %v116, %v168
    %v185 = vsub.f32 %v117, %v169
    %v186 = vsub.f32 %v118, %v170
    %v187 = vld [vmem:[#allocation7] sm:$0xff]
    %v188 = vld [vmem:[#allocation5] sm:$0xff]
    %189 = vmatprep.subr.mxu0 0.0
    %v190 = vand.u32 %v186, 4294901760
    %191 = vmatpush1.msra.mxu0 %v190
    %192 = vmatprep.subr.mxu0 0.0
    %v193 = vand.u32 %v185, 4294901760
    %194 = vmatpush1.msra.mxu0 %v193
    %195 = vmatprep.subr.mxu0 0.0
    %v196 = vand.u32 %v184, 4294901760
    %197 = vmatpush1.msra.mxu0 %v196
    %198 = vmatprep.subr.mxu0 0.0
    %v199 = vand.u32 %v183, 4294901760
    %200 = vmatpush1.msra.mxu0 %v199
    %201 = vmatprep.subr.mxu0 0.0
    %v202 = vand.u32 %v182, 4294901760
    %203 = vmatpush1.msra.mxu0 %v202
    %204 = vmatprep.subr.mxu0 0.0
    %v205 = vand.u32 %v181, 4294901760
    %206 = vmatpush1.msra.mxu0 %v205
    %207 = vmatprep.subr.mxu0 0.0
    %v208 = vand.u32 %v180, 4294901760
    %209 = vmatpush1.msra.mxu0 %v208
    %210 = vmatprep.subr.mxu0 0.0
    %v211 = vand.u32 %v179, 4294901760
    %212 = vmatpush1.msra.mxu0 %v211
    %213 = vmatprep.subr.mxu0 0.0
    %v214 = vand.u32 %v178, 4294901760
    %215 = vmatpush1.msra.mxu0 %v214
    %216 = vmatprep.subr.mxu0 0.0
    %v217 = vand.u32 %v177, 4294901760
    %218 = vmatpush1.msra.mxu0 %v217
    %219 = vmatprep.subr.mxu0 0.0
    %v220 = vand.u32 %v176, 4294901760
    %221 = vmatpush1.msra.mxu0 %v220
    %222 = vmatprep.subr.mxu0 0.0
    %v223 = vand.u32 %v175, 4294901760
    %224 = vmatpush1.msra.mxu0 %v223
    %225 = vmatprep.subr.mxu0 0.0
    %v226 = vand.u32 %v174, 4294901760
    %227 = vmatpush1.msra.mxu0 %v226
    %228 = vmatprep.subr.mxu0 0.0
    %v229 = vand.u32 %v173, 4294901760
    %230 = vmatpush1.msra.mxu0 %v229
    %231 = vmatprep.subr.mxu0 0.0
    %v232 = vand.u32 %v172, 4294901760
    %233 = vmatpush1.msra.mxu0 %v232
    %234 = vmatprep.subr.mxu0 0.0
    %v235 = vand.u32 %v171, 4294901760
    %236 = vmatpush1.msra.mxu0 %v235
    %237 = vmatprep.subr.mxu0 0.0
    %238 = vmatpush2.msra.mxu0 0.0
    %239 = vmatprep.subr.mxu0 0.0
    %240 = vmatpush2.msra.mxu0 0.0
    %241 = vmatprep.subr.mxu0 0.0
    %242 = vmatpush2.msra.mxu0 0.0
    %243 = vmatprep.subr.mxu0 0.0
    %244 = vmatpush2.msra.mxu0 0.0
    %245 = vmatprep.subr.mxu0 0.0
    %246 = vmatpush2.msra.mxu0 0.0
    %247 = vmatprep.subr.mxu0 0.0
    %248 = vmatpush2.msra.mxu0 0.0
    %249 = vmatprep.subr.mxu0 0.0
    %250 = vmatpush2.msra.mxu0 0.0
    %251 = vmatprep.subr.mxu0 0.0
    %252 = vmatpush2.msra.mxu0 0.0
    %253 = vmatprep.subr.mxu0 0.0
    %254 = vmatpush2.msra.mxu0 0.0
    %255 = vmatprep.subr.mxu0 0.0
    %256 = vmatpush2.msra.mxu0 0.0
    %257 = vmatprep.subr.mxu0 0.0
    %258 = vmatpush2.msra.mxu0 0.0
    %259 = vmatprep.subr.mxu0 0.0
    %260 = vmatpush2.msra.mxu0 0.0
    %261 = vmatprep.subr.mxu0 0.0
    %262 = vmatpush2.msra.mxu0 0.0
    %263 = vmatprep.subr.mxu0 0.0
    %264 = vmatpush2.msra.mxu0 0.0
    %265 = vmatprep.subr.mxu0 0.0
    %266 = vmatpush2.msra.mxu0 0.0
    %267 = vmatprep.subr.mxu0 0.0
    %268 = vmatpush2.msra.mxu0 0.0
    %269 = vmatprep.mubr.f32.mxu0 0.0
    %v270 = vand.u32 %v188, 4294901760
    %v271 = vsub.f32 %v188, %v270
    %v272 = vand.u32 %v271, 4294901760
    %v273 = vsub.f32 %v271, %v272
    %v274 = vand.u32 %v273, 4294901760
    %275 = vmatmul.mubr.f32.gmra.mxu0 %v274
    %v276 = vpop.f32.mrf.mxu0
    %v277 = vadd.f32 0.0, %v276
    %v278 = vpop.f32.mrf.mxu0
    %279 = vdwg.mxu0
    %280 = vmatprep.subr.mxu0 0.0
    %v281 = vand.u32 %v186, 4294901760
    %v282 = vsub.f32 %v186, %v281
    %v283 = vand.u32 %v282, 4294901760
    %v284 = vsub.f32 %v282, %v283
    %v285 = vand.u32 %v284, 4294901760
    %286 = vmatpush1.msra.mxu0 %v285
    %287 = vmatprep.subr.mxu0 0.0
    %v288 = vand.u32 %v185, 4294901760
    %v289 = vsub.f32 %v185, %v288
    %v290 = vand.u32 %v289, 4294901760
    %v291 = vsub.f32 %v289, %v290
    %v292 = vand.u32 %v291, 4294901760
    %293 = vmatpush1.msra.mxu0 %v292
    %294 = vmatprep.subr.mxu0 0.0
    %v295 = vand.u32 %v184, 4294901760
    %v296 = vsub.f32 %v184, %v295
    %v297 = vand.u32 %v296, 4294901760
    %v298 = vsub.f32 %v296, %v297
    %v299 = vand.u32 %v298, 4294901760
    %300 = vmatpush1.msra.mxu0 %v299
    %301 = vmatprep.subr.mxu0 0.0
    %v302 = vand.u32 %v183, 4294901760
    %v303 = vsub.f32 %v183, %v302
    %v304 = vand.u32 %v303, 4294901760
    %v305 = vsub.f32 %v303, %v304
    %v306 = vand.u32 %v305, 4294901760
    %307 = vmatpush1.msra.mxu0 %v306
    %308 = vmatprep.subr.mxu0 0.0
    %v309 = vand.u32 %v182, 4294901760
    %v310 = vsub.f32 %v182, %v309
    %v311 = vand.u32 %v310, 4294901760
    %v312 = vsub.f32 %v310, %v311
    %v313 = vand.u32 %v312, 4294901760
    %314 = vmatpush1.msra.mxu0 %v313
    %315 = vmatprep.subr.mxu0 0.0
    %v316 = vand.u32 %v181, 4294901760
    %v317 = vsub.f32 %v181, %v316
    %v318 = vand.u32 %v317, 4294901760
    %v319 = vsub.f32 %v317, %v318
    %v320 = vand.u32 %v319, 4294901760
    %321 = vmatpush1.msra.mxu0 %v320
    %322 = vmatprep.subr.mxu0 0.0
    %v323 = vand.u32 %v180, 4294901760
    %v324 = vsub.f32 %v180, %v323
    %v325 = vand.u32 %v324, 4294901760
    %v326 = vsub.f32 %v324, %v325
    %v327 = vand.u32 %v326, 4294901760
    %328 = vmatpush1.msra.mxu0 %v327
    %329 = vmatprep.subr.mxu0 0.0
    %v330 = vand.u32 %v179, 4294901760
    %v331 = vsub.f32 %v179, %v330
    %v332 = vand.u32 %v331, 4294901760
    %v333 = vsub.f32 %v331, %v332
    %v334 = vand.u32 %v333, 4294901760
    %335 = vmatpush1.msra.mxu0 %v334
    %336 = vmatprep.subr.mxu0 0.0
    %v337 = vand.u32 %v178, 4294901760
    %v338 = vsub.f32 %v178, %v337
    %v339 = vand.u32 %v338, 4294901760
    %v340 = vsub.f32 %v338, %v339
    %v341 = vand.u32 %v340, 4294901760
    %342 = vmatpush1.msra.mxu0 %v341
    %343 = vmatprep.subr.mxu0 0.0
    %v344 = vand.u32 %v177, 4294901760
    %v345 = vsub.f32 %v177, %v344
    %v346 = vand.u32 %v345, 4294901760
    %v347 = vsub.f32 %v345, %v346
    %v348 = vand.u32 %v347, 4294901760
    %349 = vmatpush1.msra.mxu0 %v348
    %350 = vmatprep.subr.mxu0 0.0
    %v351 = vand.u32 %v176, 4294901760
    %v352 = vsub.f32 %v176, %v351
    %v353 = vand.u32 %v352, 4294901760
    %v354 = vsub.f32 %v352, %v353
    %v355 = vand.u32 %v354, 4294901760
    %356 = vmatpush1.msra.mxu0 %v355
    %357 = vmatprep.subr.mxu0 0.0
    %v358 = vand.u32 %v175, 4294901760
    %v359 = vsub.f32 %v175, %v358
    %v360 = vand.u32 %v359, 4294901760
    %v361 = vsub.f32 %v359, %v360
    %v362 = vand.u32 %v361, 4294901760
    %363 = vmatpush1.msra.mxu0 %v362
    %364 = vmatprep.subr.mxu0 0.0
    %v365 = vand.u32 %v174, 4294901760
    %v366 = vsub.f32 %v174, %v365
    %v367 = vand.u32 %v366, 4294901760
    %v368 = vsub.f32 %v366, %v367
    %v369 = vand.u32 %v368, 4294901760
    %370 = vmatpush1.msra.mxu0 %v369
    %371 = vmatprep.subr.mxu0 0.0
    %v372 = vand.u32 %v173, 4294901760
    %v373 = vsub.f32 %v173, %v372
    %v374 = vand.u32 %v373, 4294901760
    %v375 = vsub.f32 %v373, %v374
    %v376 = vand.u32 %v375, 4294901760
    %377 = vmatpush1.msra.mxu0 %v376
    %378 = vmatprep.subr.mxu0 0.0
    %v379 = vand.u32 %v172, 4294901760
    %v380 = vsub.f32 %v172, %v379
    %v381 = vand.u32 %v380, 4294901760
    %v382 = vsub.f32 %v380, %v381
    %v383 = vand.u32 %v382, 4294901760
    %384 = vmatpush1.msra.mxu0 %v383
    %385 = vmatprep.subr.mxu0 0.0
    %v386 = vand.u32 %v171, 4294901760
    %v387 = vsub.f32 %v171, %v386
    %v388 = vand.u32 %v387, 4294901760
    %v389 = vsub.f32 %v387, %v388
    %v390 = vand.u32 %v389, 4294901760
    %391 = vmatpush1.msra.mxu0 %v390
    %392 = vmatprep.subr.mxu0 0.0
    %393 = vmatpush2.msra.mxu0 0.0
    %394 = vmatprep.subr.mxu0 0.0
    %395 = vmatpush2.msra.mxu0 0.0
    %396 = vmatprep.subr.mxu0 0.0
    %397 = vmatpush2.msra.mxu0 0.0
    %398 = vmatprep.subr.mxu0 0.0
    %399 = vmatpush2.msra.mxu0 0.0
    %400 = vmatprep.subr.mxu0 0.0
    %401 = vmatpush2.msra.mxu0 0.0
    %402 = vmatprep.subr.mxu0 0.0
    %403 = vmatpush2.msra.mxu0 0.0
    %404 = vmatprep.subr.mxu0 0.0
    %405 = vmatpush2.msra.mxu0 0.0
    %406 = vmatprep.subr.mxu0 0.0
    %407 = vmatpush2.msra.mxu0 0.0
    %408 = vmatprep.subr.mxu0 0.0
    %409 = vmatpush2.msra.mxu0 0.0
    %410 = vmatprep.subr.mxu0 0.0
    %411 = vmatpush2.msra.mxu0 0.0
    %412 = vmatprep.subr.mxu0 0.0
    %413 = vmatpush2.msra.mxu0 0.0
    %414 = vmatprep.subr.mxu0 0.0
    %415 = vmatpush2.msra.mxu0 0.0
    %416 = vmatprep.subr.mxu0 0.0
    %417 = vmatpush2.msra.mxu0 0.0
    %418 = vmatprep.subr.mxu0 0.0
    %419 = vmatpush2.msra.mxu0 0.0
    %420 = vmatprep.subr.mxu0 0.0
    %421 = vmatpush2.msra.mxu0 0.0
    %422 = vmatprep.subr.mxu0 0.0
    %423 = vmatpush2.msra.mxu0 0.0
    %424 = vmatprep.mubr.f32.mxu0 0.0
    %v425 = vand.u32 %v188, 4294901760
    %426 = vmatmul.mubr.f32.gmra.mxu0 %v425
    %v427 = vpop.f32.mrf.mxu0
    %v428 = vadd.f32 %v277, %v427
    %v429 = vpop.f32.mrf.mxu0
    %430 = vdwg.mxu0
    %431 = vmatprep.subr.mxu0 0.0
    %v432 = vand.u32 %v186, 4294901760
    %v433 = vsub.f32 %v186, %v432
    %434 = vmatpush1.msra.mxu0 %v433
    %435 = vmatprep.subr.mxu0 0.0
    %v436 = vand.u32 %v185, 4294901760
    %v437 = vsub.f32 %v185, %v436
    %438 = vmatpush1.msra.mxu0 %v437
    %439 = vmatprep.subr.mxu0 0.0
    %v440 = vand.u32 %v184, 4294901760
    %v441 = vsub.f32 %v184, %v440
    %442 = vmatpush1.msra.mxu0 %v441
    %443 = vmatprep.subr.mxu0 0.0
    %v444 = vand.u32 %v183, 4294901760
    %v445 = vsub.f32 %v183, %v444
    %446 = vmatpush1.msra.mxu0 %v445
    %447 = vmatprep.subr.mxu0 0.0
    %v448 = vand.u32 %v182, 4294901760
    %v449 = vsub.f32 %v182, %v448
    %450 = vmatpush1.msra.mxu0 %v449
    %451 = vmatprep.subr.mxu0 0.0
    %v452 = vand.u32 %v181, 4294901760
    %v453 = vsub.f32 %v181, %v452
    %454 = vmatpush1.msra.mxu0 %v453
    %455 = vmatprep.subr.mxu0 0.0
    %v456 = vand.u32 %v180, 4294901760
    %v457 = vsub.f32 %v180, %v456
    %458 = vmatpush1.msra.mxu0 %v457
    %459 = vmatprep.subr.mxu0 0.0
    %v460 = vand.u32 %v179, 4294901760
    %v461 = vsub.f32 %v179, %v460
    %462 = vmatpush1.msra.mxu0 %v461
    %463 = vmatprep.subr.mxu0 0.0
    %v464 = vand.u32 %v178, 4294901760
    %v465 = vsub.f32 %v178, %v464
    %466 = vmatpush1.msra.mxu0 %v465
    %467 = vmatprep.subr.mxu0 0.0
    %v468 = vand.u32 %v177, 4294901760
    %v469 = vsub.f32 %v177, %v468
    %470 = vmatpush1.msra.mxu0 %v469
    %471 = vmatprep.subr.mxu0 0.0
    %v472 = vand.u32 %v176, 4294901760
    %v473 = vsub.f32 %v176, %v472
    %474 = vmatpush1.msra.mxu0 %v473
    %475 = vmatprep.subr.mxu0 0.0
    %v476 = vand.u32 %v175, 4294901760
    %v477 = vsub.f32 %v175, %v476
    %478 = vmatpush1.msra.mxu0 %v477
    %479 = vmatprep.subr.mxu0 0.0
    %v480 = vand.u32 %v174, 4294901760
    %v481 = vsub.f32 %v174, %v480
    %482 = vmatpush1.msra.mxu0 %v481
    %483 = vmatprep.subr.mxu0 0.0
    %v484 = vand.u32 %v173, 4294901760
    %v485 = vsub.f32 %v173, %v484
    %486 = vmatpush1.msra.mxu0 %v485
    %487 = vmatprep.subr.mxu0 0.0
    %v488 = vand.u32 %v172, 4294901760
    %v489 = vsub.f32 %v172, %v488
    %490 = vmatpush1.msra.mxu0 %v489
    %491 = vmatprep.subr.mxu0 0.0
    %v492 = vand.u32 %v171, 4294901760
    %v493 = vsub.f32 %v171, %v492
    %494 = vmatpush1.msra.mxu0 %v493
    %495 = vmatprep.subr.mxu0 0.0
    %496 = vmatpush2.msra.mxu0 0.0
    %497 = vmatprep.subr.mxu0 0.0
    %498 = vmatpush2.msra.mxu0 0.0
    %499 = vmatprep.subr.mxu0 0.0
    %500 = vmatpush2.msra.mxu0 0.0
    %501 = vmatprep.subr.mxu0 0.0
    %502 = vmatpush2.msra.mxu0 0.0
    %503 = vmatprep.subr.mxu0 0.0
    %504 = vmatpush2.msra.mxu0 0.0
    %505 = vmatprep.subr.mxu0 0.0
    %506 = vmatpush2.msra.mxu0 0.0
    %507 = vmatprep.subr.mxu0 0.0
    %508 = vmatpush2.msra.mxu0 0.0
    %509 = vmatprep.subr.mxu0 0.0
    %510 = vmatpush2.msra.mxu0 0.0
    %511 = vmatprep.subr.mxu0 0.0
    %512 = vmatpush2.msra.mxu0 0.0
    %513 = vmatprep.subr.mxu0 0.0
    %514 = vmatpush2.msra.mxu0 0.0
    %515 = vmatprep.subr.mxu0 0.0
    %516 = vmatpush2.msra.mxu0 0.0
    %517 = vmatprep.subr.mxu0 0.0
    %518 = vmatpush2.msra.mxu0 0.0
    %519 = vmatprep.subr.mxu0 0.0
    %520 = vmatpush2.msra.mxu0 0.0
    %521 = vmatprep.subr.mxu0 0.0
    %522 = vmatpush2.msra.mxu0 0.0
    %523 = vmatprep.subr.mxu0 0.0
    %524 = vmatpush2.msra.mxu0 0.0
    %525 = vmatprep.subr.mxu0 0.0
    %526 = vmatpush2.msra.mxu0 0.0
    %527 = vmatprep.mubr.f32.mxu0 0.0
    %v528 = vand.u32 %v188, 4294901760
    %v529 = vsub.f32 %v188, %v528
    %530 = vmatmul.mubr.f32.gmra.mxu0 %v529
    %v531 = vpop.f32.mrf.mxu0
    %v532 = vadd.f32 %v428, %v531
    %v533 = vpop.f32.mrf.mxu0
    %534 = vdwg.mxu0
    %535 = vmatprep.subr.mxu0 0.0
    %v536 = vand.u32 %v186, 4294901760
    %537 = vmatpush1.msra.mxu0 %v536
    %538 = vmatprep.subr.mxu0 0.0
    %v539 = vand.u32 %v185, 4294901760
    %540 = vmatpush1.msra.mxu0 %v539
    %541 = vmatprep.subr.mxu0 0.0
    %v542 = vand.u32 %v184, 4294901760
    %543 = vmatpush1.msra.mxu0 %v542
    %544 = vmatprep.subr.mxu0 0.0
    %v545 = vand.u32 %v183, 4294901760
    %546 = vmatpush1.msra.mxu0 %v545
    %547 = vmatprep.subr.mxu0 0.0
    %v548 = vand.u32 %v182, 4294901760
    %549 = vmatpush1.msra.mxu0 %v548
    %550 = vmatprep.subr.mxu0 0.0
    %v551 = vand.u32 %v181, 4294901760
    %552 = vmatpush1.msra.mxu0 %v551
    %553 = vmatprep.subr.mxu0 0.0
    %v554 = vand.u32 %v180, 4294901760
    %555 = vmatpush1.msra.mxu0 %v554
    %556 = vmatprep.subr.mxu0 0.0
    %v557 = vand.u32 %v179, 4294901760
    %558 = vmatpush1.msra.mxu0 %v557
    %559 = vmatprep.subr.mxu0 0.0
    %v560 = vand.u32 %v178, 4294901760
    %561 = vmatpush1.msra.mxu0 %v560
    %562 = vmatprep.subr.mxu0 0.0
    %v563 = vand.u32 %v177, 4294901760
    %564 = vmatpush1.msra.mxu0 %v563
    %565 = vmatprep.subr.mxu0 0.0
    %v566 = vand.u32 %v176, 4294901760
    %567 = vmatpush1.msra.mxu0 %v566
    %568 = vmatprep.subr.mxu0 0.0
    %v569 = vand.u32 %v175, 4294901760
    %570 = vmatpush1.msra.mxu0 %v569
    %571 = vmatprep.subr.mxu0 0.0
    %v572 = vand.u32 %v174, 4294901760
    %573 = vmatpush1.msra.mxu0 %v572
    %574 = vmatprep.subr.mxu0 0.0
    %v575 = vand.u32 %v173, 4294901760
    %576 = vmatpush1.msra.mxu0 %v575
    %577 = vmatprep.subr.mxu0 0.0
    %v578 = vand.u32 %v172, 4294901760
    %579 = vmatpush1.msra.mxu0 %v578
    %580 = vmatprep.subr.mxu0 0.0
    %v581 = vand.u32 %v171, 4294901760
    %582 = vmatpush1.msra.mxu0 %v581
    %583 = vmatprep.subr.mxu0 0.0
    %584 = vmatpush2.msra.mxu0 0.0
    %585 = vmatprep.subr.mxu0 0.0
    %586 = vmatpush2.msra.mxu0 0.0
    %587 = vmatprep.subr.mxu0 0.0
    %588 = vmatpush2.msra.mxu0 0.0
    %589 = vmatprep.subr.mxu0 0.0
    %590 = vmatpush2.msra.mxu0 0.0
    %591 = vmatprep.subr.mxu0 0.0
    %592 = vmatpush2.msra.mxu0 0.0
    %593 = vmatprep.subr.mxu0 0.0
    %594 = vmatpush2.msra.mxu0 0.0
    %595 = vmatprep.subr.mxu0 0.0
    %596 = vmatpush2.msra.mxu0 0.0
    %597 = vmatprep.subr.mxu0 0.0
    %598 = vmatpush2.msra.mxu0 0.0
    %599 = vmatprep.subr.mxu0 0.0
    %600 = vmatpush2.msra.mxu0 0.0
    %601 = vmatprep.subr.mxu0 0.0
    %602 = vmatpush2.msra.mxu0 0.0
    %603 = vmatprep.subr.mxu0 0.0
    %604 = vmatpush2.msra.mxu0 0.0
    %605 = vmatprep.subr.mxu0 0.0
    %606 = vmatpush2.msra.mxu0 0.0
    %607 = vmatprep.subr.mxu0 0.0
    %608 = vmatpush2.msra.mxu0 0.0
    %609 = vmatprep.subr.mxu0 0.0
    %610 = vmatpush2.msra.mxu0 0.0
    %611 = vmatprep.subr.mxu0 0.0
    %612 = vmatpush2.msra.mxu0 0.0
    %613 = vmatprep.subr.mxu0 0.0
    %614 = vmatpush2.msra.mxu0 0.0
    %615 = vmatprep.mubr.f32.mxu0 0.0
    %v616 = vand.u32 %v188, 4294901760
    %v617 = vsub.f32 %v188, %v616
    %v618 = vand.u32 %v617, 4294901760
    %619 = vmatmul.mubr.f32.gmra.mxu0 %v618
    %v620 = vpop.f32.mrf.mxu0
    %v621 = vadd.f32 %v532, %v620
    %v622 = vpop.f32.mrf.mxu0
    %623 = vdwg.mxu0
    %624 = vmatprep.subr.mxu0 0.0
    %v625 = vand.u32 %v186, 4294901760
    %v626 = vsub.f32 %v186, %v625
    %v627 = vand.u32 %v626, 4294901760
    %628 = vmatpush1.msra.mxu0 %v627
    %629 = vmatprep.subr.mxu0 0.0
    %v630 = vand.u32 %v185, 4294901760
    %v631 = vsub.f32 %v185, %v630
    %v632 = vand.u32 %v631, 4294901760
    %633 = vmatpush1.msra.mxu0 %v632
    %634 = vmatprep.subr.mxu0 0.0
    %v635 = vand.u32 %v184, 4294901760
    %v636 = vsub.f32 %v184, %v635
    %v637 = vand.u32 %v636, 4294901760
    %638 = vmatpush1.msra.mxu0 %v637
    %639 = vmatprep.subr.mxu0 0.0
    %v640 = vand.u32 %v183, 4294901760
    %v641 = vsub.f32 %v183, %v640
    %v642 = vand.u32 %v641, 4294901760
    %643 = vmatpush1.msra.mxu0 %v642
    %644 = vmatprep.subr.mxu0 0.0
    %v645 = vand.u32 %v182, 4294901760
    %v646 = vsub.f32 %v182, %v645
    %v647 = vand.u32 %v646, 4294901760
    %648 = vmatpush1.msra.mxu0 %v647
    %649 = vmatprep.subr.mxu0 0.0
    %v650 = vand.u32 %v181, 4294901760
    %v651 = vsub.f32 %v181, %v650
    %v652 = vand.u32 %v651, 4294901760
    %653 = vmatpush1.msra.mxu0 %v652
    %654 = vmatprep.subr.mxu0 0.0
    %v655 = vand.u32 %v180, 4294901760
    %v656 = vsub.f32 %v180, %v655
    %v657 = vand.u32 %v656, 4294901760
    %658 = vmatpush1.msra.mxu0 %v657
    %659 = vmatprep.subr.mxu0 0.0
    %v660 = vand.u32 %v179, 4294901760
    %v661 = vsub.f32 %v179, %v660
    %v662 = vand.u32 %v661, 4294901760
    %663 = vmatpush1.msra.mxu0 %v662
    %664 = vmatprep.subr.mxu0 0.0
    %v665 = vand.u32 %v178, 4294901760
    %v666 = vsub.f32 %v178, %v665
    %v667 = vand.u32 %v666, 4294901760
    %668 = vmatpush1.msra.mxu0 %v667
    %669 = vmatprep.subr.mxu0 0.0
    %v670 = vand.u32 %v177, 4294901760
    %v671 = vsub.f32 %v177, %v670
    %v672 = vand.u32 %v671, 4294901760
    %673 = vmatpush1.msra.mxu0 %v672
    %674 = vmatprep.subr.mxu0 0.0
    %v675 = vand.u32 %v176, 4294901760
    %v676 = vsub.f32 %v176, %v675
    %v677 = vand.u32 %v676, 4294901760
    %678 = vmatpush1.msra.mxu0 %v677
    %679 = vmatprep.subr.mxu0 0.0
    %v680 = vand.u32 %v175, 4294901760
    %v681 = vsub.f32 %v175, %v680
    %v682 = vand.u32 %v681, 4294901760
    %683 = vmatpush1.msra.mxu0 %v682
    %684 = vmatprep.subr.mxu0 0.0
    %v685 = vand.u32 %v174, 4294901760
    %v686 = vsub.f32 %v174, %v685
    %v687 = vand.u32 %v686, 4294901760
    %688 = vmatpush1.msra.mxu0 %v687
    %689 = vmatprep.subr.mxu0 0.0
    %v690 = vand.u32 %v173, 4294901760
    %v691 = vsub.f32 %v173, %v690
    %v692 = vand.u32 %v691, 4294901760
    %693 = vmatpush1.msra.mxu0 %v692
    %694 = vmatprep.subr.mxu0 0.0
    %v695 = vand.u32 %v172, 4294901760
    %v696 = vsub.f32 %v172, %v695
    %v697 = vand.u32 %v696, 4294901760
    %698 = vmatpush1.msra.mxu0 %v697
    %699 = vmatprep.subr.mxu0 0.0
    %v700 = vand.u32 %v171, 4294901760
    %v701 = vsub.f32 %v171, %v700
    %v702 = vand.u32 %v701, 4294901760
    %703 = vmatpush1.msra.mxu0 %v702
    %704 = vmatprep.subr.mxu0 0.0
    %705 = vmatpush2.msra.mxu0 0.0
    %706 = vmatprep.subr.mxu0 0.0
    %707 = vmatpush2.msra.mxu0 0.0
    %708 = vmatprep.subr.mxu0 0.0
    %709 = vmatpush2.msra.mxu0 0.0
    %710 = vmatprep.subr.mxu0 0.0
    %711 = vmatpush2.msra.mxu0 0.0
    %712 = vmatprep.subr.mxu0 0.0
    %713 = vmatpush2.msra.mxu0 0.0
    %714 = vmatprep.subr.mxu0 0.0
    %715 = vmatpush2.msra.mxu0 0.0
    %716 = vmatprep.subr.mxu0 0.0
    %717 = vmatpush2.msra.mxu0 0.0
    %718 = vmatprep.subr.mxu0 0.0
    %719 = vmatpush2.msra.mxu0 0.0
    %720 = vmatprep.subr.mxu0 0.0
    %721 = vmatpush2.msra.mxu0 0.0
    %722 = vmatprep.subr.mxu0 0.0
    %723 = vmatpush2.msra.mxu0 0.0
    %724 = vmatprep.subr.mxu0 0.0
    %725 = vmatpush2.msra.mxu0 0.0
    %726 = vmatprep.subr.mxu0 0.0
    %727 = vmatpush2.msra.mxu0 0.0
    %728 = vmatprep.subr.mxu0 0.0
    %729 = vmatpush2.msra.mxu0 0.0
    %730 = vmatprep.subr.mxu0 0.0
    %731 = vmatpush2.msra.mxu0 0.0
    %732 = vmatprep.subr.mxu0 0.0
    %733 = vmatpush2.msra.mxu0 0.0
    %734 = vmatprep.subr.mxu0 0.0
    %735 = vmatpush2.msra.mxu0 0.0
    %736 = vmatprep.mubr.f32.mxu0 0.0
    %v737 = vand.u32 %v188, 4294901760
    %738 = vmatmul.mubr.f32.gmra.mxu0 %v737
    %v739 = vpop.f32.mrf.mxu0
    %v740 = vadd.f32 %v621, %v739
    %v741 = vpop.f32.mrf.mxu0
    %742 = vdwg.mxu0
    %743 = vmatprep.subr.mxu0 0.0
    %v744 = vand.u32 %v186, 4294901760
    %745 = vmatpush1.msra.mxu0 %v744
    %746 = vmatprep.subr.mxu0 0.0
    %v747 = vand.u32 %v185, 4294901760
    %748 = vmatpush1.msra.mxu0 %v747
    %749 = vmatprep.subr.mxu0 0.0
    %v750 = vand.u32 %v184, 4294901760
    %751 = vmatpush1.msra.mxu0 %v750
    %752 = vmatprep.subr.mxu0 0.0
    %v753 = vand.u32 %v183, 4294901760
    %754 = vmatpush1.msra.mxu0 %v753
    %755 = vmatprep.subr.mxu0 0.0
    %v756 = vand.u32 %v182, 4294901760
    %757 = vmatpush1.msra.mxu0 %v756
    %758 = vmatprep.subr.mxu0 0.0
    %v759 = vand.u32 %v181, 4294901760
    %760 = vmatpush1.msra.mxu0 %v759
    %761 = vmatprep.subr.mxu0 0.0
    %v762 = vand.u32 %v180, 4294901760
    %763 = vmatpush1.msra.mxu0 %v762
    %764 = vmatprep.subr.mxu0 0.0
    %v765 = vand.u32 %v179, 4294901760
    %766 = vmatpush1.msra.mxu0 %v765
    %767 = vmatprep.subr.mxu0 0.0
    %v768 = vand.u32 %v178, 4294901760
    %769 = vmatpush1.msra.mxu0 %v768
    %770 = vmatprep.subr.mxu0 0.0
    %v771 = vand.u32 %v177, 4294901760
    %772 = vmatpush1.msra.mxu0 %v771
    %773 = vmatprep.subr.mxu0 0.0
    %v774 = vand.u32 %v176, 4294901760
    %775 = vmatpush1.msra.mxu0 %v774
    %776 = vmatprep.subr.mxu0 0.0
    %v777 = vand.u32 %v175, 4294901760
    %778 = vmatpush1.msra.mxu0 %v777
    %779 = vmatprep.subr.mxu0 0.0
    %v780 = vand.u32 %v174, 4294901760
    %781 = vmatpush1.msra.mxu0 %v780
    %782 = vmatprep.subr.mxu0 0.0
    %v783 = vand.u32 %v173, 4294901760
    %784 = vmatpush1.msra.mxu0 %v783
    %785 = vmatprep.subr.mxu0 0.0
    %v786 = vand.u32 %v172, 4294901760
    %787 = vmatpush1.msra.mxu0 %v786
    %788 = vmatprep.subr.mxu0 0.0
    %v789 = vand.u32 %v171, 4294901760
    %790 = vmatpush1.msra.mxu0 %v789
    %791 = vmatprep.subr.mxu0 0.0
    %792 = vmatpush2.msra.mxu0 0.0
    %793 = vmatprep.subr.mxu0 0.0
    %794 = vmatpush2.msra.mxu0 0.0
    %795 = vmatprep.subr.mxu0 0.0
    %796 = vmatpush2.msra.mxu0 0.0
    %797 = vmatprep.subr.mxu0 0.0
    %798 = vmatpush2.msra.mxu0 0.0
    %799 = vmatprep.subr.mxu0 0.0
    %800 = vmatpush2.msra.mxu0 0.0
    %801 = vmatprep.subr.mxu0 0.0
    %802 = vmatpush2.msra.mxu0 0.0
    %803 = vmatprep.subr.mxu0 0.0
    %804 = vmatpush2.msra.mxu0 0.0
    %805 = vmatprep.subr.mxu0 0.0
    %806 = vmatpush2.msra.mxu0 0.0
    %807 = vmatprep.subr.mxu0 0.0
    %808 = vmatpush2.msra.mxu0 0.0
    %809 = vmatprep.subr.mxu0 0.0
    %810 = vmatpush2.msra.mxu0 0.0
    %811 = vmatprep.subr.mxu0 0.0
    %812 = vmatpush2.msra.mxu0 0.0
    %813 = vmatprep.subr.mxu0 0.0
    %814 = vmatpush2.msra.mxu0 0.0
    %815 = vmatprep.subr.mxu0 0.0
    %816 = vmatpush2.msra.mxu0 0.0
    %817 = vmatprep.subr.mxu0 0.0
    %818 = vmatpush2.msra.mxu0 0.0
    %819 = vmatprep.subr.mxu0 0.0
    %820 = vmatpush2.msra.mxu0 0.0
    %821 = vmatprep.subr.mxu0 0.0
    %822 = vmatpush2.msra.mxu0 0.0
    %823 = vmatprep.mubr.f32.mxu0 0.0
    %v824 = vand.u32 %v188, 4294901760
    %825 = vmatmul.mubr.f32.gmra.mxu0 %v824
    %v826 = vpop.f32.mrf.mxu0
    %v827 = vadd.f32 %v740, %v826
    %v828 = vpop.f32.mrf.mxu0
    %829 = vdwg.mxu0
    %v830 = vadd.f32 %v187, %v827
    %831 = vst [vmem:[#allocation7] sm:$0xff] %v830
    // Predicated region
    $region22: #{tpu_custom_call.1} parent=1 // pred_check
      %p832 = pneg %p39
    $region23: #{tpu_custom_call.1} parent=1 // pred_check_branch
      %834 = sbr.rel (%p832) target = $region25
    $region24: #{tpu_custom_call.1} parent=1 // pred_region
      %v835 = vld [vmem:[#allocation7] sm:$0xff]
      %v836 = vand.u32 2147483647, %v835
      %v837 = vrot.slane %v836, 4
      %v838 = vmax.f32 %v836, %v837
      %v839 = vrot.slane %v838, 2
      %v840 = vmax.f32 %v838, %v839
      %v841 = vrot.slane %v840, 1
      %v842 = vmax.f32 %v840, %v841
      %843 = vst [vmem:[#allocation8] sm:$0x1] %v842
    $region25: #{tpu_custom_call.1} parent=1 // pred_fallthru
      _
    // Predicated region
    $region26: #{tpu_custom_call.1} parent=1 // pred_check
      _
    $region27: #{tpu_custom_call.1} parent=1 // pred_check_branch
      %845 = sbr.rel (0) target = $region29
    $region28: #{tpu_custom_call.1} parent=1 // pred_region
      %s847 = ssub.s32 128, 128
      %848 = vsyncadd [#allocation4], %s847
      %s850 = sshll.u32 [#allocation7], 4
      %s851 = int_to_ptr.vmem [resolvable:$true] %s850
      %853 = dma.vmem_to_hbm [thread:$0]  %s851, 128, %s2, [#allocation4]
    $region29: #{tpu_custom_call.1} parent=1 // pred_fallthru
      _
    // Predicated region
    $region30: #{tpu_custom_call.1} parent=1 // pred_check
      _
    $region31: #{tpu_custom_call.1} parent=1 // pred_check_branch
      %855 = sbr.rel (0) target = $region33
    $region32: #{tpu_custom_call.1} parent=1 // pred_region
      %s857 = ssub.s32 16, 16
      %858 = vsyncadd [#allocation9], %s857
      %s860 = sshll.u32 [#allocation8], 4
      %s861 = int_to_ptr.vmem [resolvable:$true] %s860
      %863 = dma.vmem_to_hbm [thread:$0]  %s861, 16, %s3, [#allocation9]
    $region33: #{tpu_custom_call.1} parent=1 // pred_fallthru
      _
    // Predicated region
    $region34: #{tpu_custom_call.1} parent=1 // pred_check
      _
    $region35: #{tpu_custom_call.1} parent=1 // pred_check_branch
      %865 = sbr.rel (0) target = $region37
    $region36: #{tpu_custom_call.1} parent=1 // pred_region
      %866 = dma.done [#allocation4], 128
    $region37: #{tpu_custom_call.1} parent=1 // pred_fallthru
      _
    // Predicated region
    $region38: #{tpu_custom_call.1} parent=1 // pred_check
      _
    $region39: #{tpu_custom_call.1} parent=1 // pred_check_branch
      %868 = sbr.rel (0) target = $region41
    $region40: #{tpu_custom_call.1} parent=1 // pred_region
      %869 = dma.done [#allocation9], 16
    $region41: #{tpu_custom_call.1} parent=1 // pred_fallthru
      _
    %870 = vsyncpa [#allocation3], 1
    %871 = vsyncpa [#allocation6], 1
    %872 = vsyncpa [#allocation4], 1
    %873 = vsyncpa [#allocation9], 1

</llo_original>
